<compile_context>
chip_gen: v5e
topology: v5e:2x2
jax: 0.10.0
libtpu: 0.0.40
codegen_flags: <defaults>
</compile_context>

<pallas_src>
import functools
import math

import jax
import jax.numpy as jnp
from jax.experimental import pallas as pl
from jax.experimental.pallas import tpu as pltpu


def _pe_rows_kernel(inv_freq_ref, o_ref):
    """Row layout: output block is (TM, d_model); rows = positions.
    Used when d_model % 128 == 0 (stores are already full-lane)."""
    tm = o_ref.shape[0]
    pos = (pl.program_id(0) * tm
           + jax.lax.broadcasted_iota(jnp.int32, o_ref.shape, 0)).astype(jnp.float32)
    ang = pos * inv_freq_ref[...]                       # same rounding as PyTorch product
    odd = (jax.lax.broadcasted_iota(jnp.int32, o_ref.shape, 1) & 1) == 1
    o_ref[...] = jnp.where(odd, jnp.cos(ang), jnp.sin(ang))


def _pe_flat_kernel(inv_freq_ref, pos_ref, o_ref, *, positions_per_tile):
    """Lane-dense layout for d_model not a multiple of 128: the (L, D) table is
    produced as (L*D//128, 128) so every store is a full 128-lane vst.
    inv_freq_ref / pos_ref are host-built (TR, 128) constant slabs for one tile."""
    start = (pl.program_id(0) * positions_per_tile).astype(jnp.float32)
    pos = start + pos_ref[...]                          # exact: integer-valued f32 add
    ang = pos * inv_freq_ref[...]                       # same rounding as PyTorch product
    # Column parity == lane parity (d_model and 128 both even), so no mask input needed.
    odd = (jax.lax.broadcasted_iota(jnp.int32, o_ref.shape, 1) & 1) == 1
    o_ref[...] = jnp.where(odd, jnp.cos(ang), jnp.sin(ang))


def _pick_row_tile(n_rows, row_bytes, unit, max_step_bytes):
    """Largest `unit`-aligned row tile with per-step size ~[512 KiB, max_step_bytes].
    Targets total/4 per step so tables >= 1 MiB get >= 2 grid steps (v7x megacore +
    writeback overlap) while steps stay big enough that per-step overhead (~0.35 us)
    is negligible on v5e.  Double-buffered blocks stay well inside the default scoped
    VMEM limit on every generation (v7x has only 64 MiB physical)."""
    if n_rows <= unit:
        return n_rows                                   # full extent is always legal
    total = n_rows * row_bytes
    step_target = min(max(total // 4, 512 * 1024), max_step_bytes)
    t = max(unit, (step_target // row_bytes) // unit * unit)
    return min(t, n_rows)


@functools.lru_cache(maxsize=None)          # init-time constant: build once, reuse
def positional_embedding(d_model: int, max_len: int = 512, row_tile=None) -> jax.Array:
    """Returns pe of shape (1, max_len, d_model), float32 (same as the PyTorch buffer)."""
    assert d_model % 2 == 0, "d_model must be even (sin/cos pairs)"
    neg_log = -math.log(10000.0) / d_model
    compiler_params = pltpu.CompilerParams(
        dimension_semantics=("parallel",),              # v7x megacore; no-op on v5e/v6e
    )

    g = math.gcd(d_model, 128)
    # Lane-dense flattened path whenever d_model is NOT a 128 multiple and the table
    # flattens cleanly into period-aligned rows of 128 lanes.
    lane_dense = (d_model % 128 != 0) and ((max_len * g) % 128 == 0)

    if lane_dense:
        n_rows = (max_len * d_model) // 128
        period_rows = d_model // g                      # flat rows per column-pattern period
        unit = 8 * period_rows // math.gcd(8, period_rows)      # lcm(8, period_rows)
        tr = row_tile if row_tile is not None else _pick_row_tile(n_rows, 128 * 4, unit, 1 << 20)
        assert tr == n_rows or (tr % unit == 0 and tr <= n_rows), \
            f"row_tile must be a multiple of {unit} (or == {n_rows})"
        positions_per_tile = (tr * 128) // d_model      # exact by construction

        # Host-built per-tile constants (exp over one tile only; reused every grid step).
        flat_idx = jnp.arange(tr * 128, dtype=jnp.int32).reshape(tr, 128)
        col = flat_idx % d_model
        inv_freq = jnp.exp((col & ~1).astype(jnp.float32) * neg_log)
        pos_in_tile = (flat_idx // d_model).astype(jnp.float32)

        flat = pl.pallas_call(
            functools.partial(_pe_flat_kernel, positions_per_tile=positions_per_tile),
            out_shape=jax.ShapeDtypeStruct((n_rows, 128), jnp.float32),
            grid=(pl.cdiv(n_rows, tr),),
            in_specs=[pl.BlockSpec((tr, 128), lambda i: (0, 0)),
                      pl.BlockSpec((tr, 128), lambda i: (0, 0))],
            out_specs=pl.BlockSpec((tr, 128), lambda i: (i, 0)),
            compiler_params=compiler_params,
        )(inv_freq, pos_in_tile)
        # Row-major contiguous (n_rows,128) -> (max_len,d_model): same linear order,
        # default layouts on both sides, so this lowers to a bitcast (no HBM copy).
        pe2d = flat.reshape(max_len, d_model)
    else:
        # Row path: d_model % 128 == 0 (stores already lane dense), or the rare
        # non-flattenable leftover (tiny tables), where masked stores are harmless.
        col = jnp.arange(d_model, dtype=jnp.int32)
        inv_freq = jnp.exp((col & ~1).astype(jnp.float32) * neg_log)[None, :]
        tm = row_tile if row_tile is not None else _pick_row_tile(max_len, d_model * 4, 8, 2 << 20)
        assert tm == max_len or (tm % 8 == 0 and tm <= max_len), \
            f"row_tile must be a multiple of 8 (or == {max_len})"
        pe2d = pl.pallas_call(
            _pe_rows_kernel,
            out_shape=jax.ShapeDtypeStruct((max_len, d_model), jnp.float32),
            grid=(pl.cdiv(max_len, tm),),
            in_specs=[pl.BlockSpec((1, d_model), lambda i: (0, 0))],
            out_specs=pl.BlockSpec((tm, d_model), lambda i: (i, 0)),
            compiler_params=compiler_params,
        )(inv_freq)

    return pe2d[None]                                   # (1, max_len, d_model), like unsqueeze(0)


def _reference(d_model: int, max_len: int) -> jax.Array:
    # Pure-JAX mirror of the PyTorch __init__ math.
    position = jnp.arange(max_len, dtype=jnp.float32)[:, None]
    div_term = jnp.exp(jnp.arange(0, d_model, 2, dtype=jnp.float32)
                       * -(math.log(10000.0) / d_model))
    pe = jnp.zeros((max_len, d_model), jnp.float32)
    pe = pe.at[:, 0::2].set(jnp.sin(position * div_term))
    pe = pe.at[:, 1::2].set(jnp.cos(position * div_term))
    return pe[None]


if __name__ == "__main__":
    _ = jax.random.PRNGKey(0)   # forward() takes no tensor inputs; key for API symmetry only.

    cases = [
        # (d_model, max_len, row_tile)
        (32,  64,  8),      # flat path, d_model < 128, 2 grid steps
        (192, 64,  48),     # flat path, d_model >= 128 and not a 128 multiple, 2 grid steps
        (256, 48,  16),     # row path, 3 grid steps
        (512, 512, None),   # module defaults: row path, auto tile -> 2 steps, realistic max_len
    ]
    for d_model, max_len, rt in cases:
        pe = jax.block_until_ready(positional_embedding(d_model, max_len, rt))
        ref = _reference(d_model, max_len)
        assert pe.shape == (1, max_len, d_model) and pe.dtype == jnp.float32
        err = float(jnp.max(jnp.abs(pe - ref)))
        # Kernel reproduces the reference argument math bit-for-bit (cos computed
        # directly for odd columns), so the tolerance is just safety margin.
        assert jnp.allclose(pe, ref, atol=1e-5, rtol=1e-5), (d_model, max_len, err)

    print("KERNEL_OK")
</pallas_src>

<mosaic_0001>
module attributes {stable_mosaic.version = 11 : i64} {
  func.func @_pe_flat_kernel(%arg0: i32, %arg1: memref<8x128xf32, #tpu.memory_space<vmem>>, %arg2: memref<8x128xf32, #tpu.memory_space<vmem>>, %arg3: memref<8x128xf32, #tpu.memory_space<vmem>>) attributes {dimension_semantics = [#tpu.dimension_semantics<parallel>], iteration_bounds = array<i64: 2>, scalar_prefetch = 0 : i64, scratch_operands = 0 : i64, tpu.core_type = #tpu.core_type<tc>, window_params = [{pipeline_mode = #tpu.pipeline_mode<synchronous>, transform_indices = @transform_0, window_bounds = array<i64: 8, 128>}, {pipeline_mode = #tpu.pipeline_mode<synchronous>, transform_indices = @transform_1, window_bounds = array<i64: 8, 128>}, {transform_indices = @transform_2, window_bounds = array<i64: 8, 128>}]} {
    %c32_i32 = arith.constant 32 : i32
    %0 = arith.muli %arg0, %c32_i32 : i32
    %1 = arith.sitofp %0 : i32 to f32
    %c0 = arith.constant 0 : index
    %c0_0 = arith.constant 0 : index
    %2 = vector.load %arg2[%c0, %c0_0] : memref<8x128xf32, #tpu.memory_space<vmem>>, vector<8x128xf32>
    %3 = vector.broadcast %1 : f32 to vector<8x128xf32>
    %4 = arith.addf %3, %2 : vector<8x128xf32>
    %c0_1 = arith.constant 0 : index
    %c0_2 = arith.constant 0 : index
    %5 = vector.load %arg1[%c0_1, %c0_2] : memref<8x128xf32, #tpu.memory_space<vmem>>, vector<8x128xf32>
    %6 = arith.mulf %4, %5 : vector<8x128xf32>
    %7 = tpu.iota {dimensions = array<i32: 1>} : vector<8x128xi32>
    %c1_i32 = arith.constant 1 : i32
    %8 = vector.broadcast %c1_i32 : i32 to vector<8x128xi32>
    %9 = arith.andi %7, %8 : vector<8x128xi32>
    %c1_i32_3 = arith.constant 1 : i32
    %10 = vector.broadcast %c1_i32_3 : i32 to vector<8x128xi32>
    %11 = arith.cmpi eq, %9, %10 : vector<8x128xi32>
    %12 = math.cos %6 : vector<8x128xf32>
    %13 = math.sin %6 : vector<8x128xf32>
    %14 = arith.select %11, %12, %13 : vector<8x128xi1>, vector<8x128xf32>
    %c0_4 = arith.constant 0 : index
    %c0_5 = arith.constant 0 : index
    %15 = vector.load %arg3[%c0_4, %c0_5] : memref<8x128xf32, #tpu.memory_space<vmem>>, vector<8x128xf32>
    tpu.vector_store %arg3[%c0_4, %c0_5], %14 {strides = array<i32>} : memref<8x128xf32, #tpu.memory_space<vmem>>, vector<8x128xf32>,
    return
  }
  func.func @transform_0(%arg0: i32) -> (i32, i32) {
    %c0_i32 = arith.constant 0 : i32
    %c0_i32_0 = arith.constant 0 : i32
    %c0_i32_1 = arith.constant 0 : i32
    return %c0_i32, %c0_i32_0 : i32, i32
  }
  func.func @transform_1(%arg0: i32) -> (i32, i32) {
    %c0_i32 = arith.constant 0 : i32
    %c0_i32_0 = arith.constant 0 : i32
    %c0_i32_1 = arith.constant 0 : i32
    return %c0_i32, %c0_i32_0 : i32, i32
  }
  func.func @transform_2(%arg0: i32) -> (i32, i32) {
    %c0_i32 = arith.constant 0 : i32
    %c0_i32_0 = arith.constant 0 : i32
    return %arg0, %c0_i32 : i32, i32
  }
}

</mosaic_0001>

<llo_original>
// kernel: tpu_custom_call.1
$region0: #{tpu_custom_call.1}
  #allocation0 [shape = 'u32[]', space=smem, size = 0x4, offset = 0x4, fixed_abs, tag = 'smem constant byte address 0x4 - core index']
  #allocation1 [shape = 'u32[72,128]{1,0:T(1,128)}', space=vmem, size = 0x9000, scoped, tag = 'internal scratch']
  %s0 = inlined_call_operand.hbm [shape: f32[8,128], index: 0, kind: input, shape index: {}]
  %s1 = inlined_call_operand.hbm [shape: f32[8,128], index: 1, kind: input, shape index: {}]
  %s2 = inlined_call_operand.hbm [shape: f32[16,128], index: 2, kind: output, shape index: {}]
  %s3 = sld [smem:[#allocation0]]
  $region49: #{tpu_custom_call.1} parent=0
    _
  %s5 = ssub.s32 1, %s3
  %s6 = scalar_select 0, %s5, %s3
  $region1: #{tpu_custom_call.1} parent=0
    #allocation2 [shape = 'u8[4096]{0}', space=vmem, size = 0x1000, scoped, tag = 'input window, operand 0, single buffered']
    #allocation3 [shape = 's32[2]{0}', space=sflag, size = 0x8, scoped, tag = 'scoped memory for tpu_custom_call.1']
    #allocation4 [shape = 's32[2]{0}', space=sflag, size = 0x8, scoped, tag = 'scoped memory for tpu_custom_call.1']
    #allocation5 [shape = 'u8[4096]{0}', space=vmem, size = 0x1000, scoped, tag = 'input window, operand 1, single buffered']
    #allocation6 [shape = 's32[1]{0}', space=sflag, size = 0x4, scoped, tag = 'scoped memory for tpu_custom_call.1']
    #allocation7 [shape = 'u8[8192]{0}', space=vmem, size = 0x2000, scoped, tag = 'output window, operand 0']
    %7 = vsyncpa [#allocation3], 0
    %8 = vsyncpa [#allocation6], 0
    %9 = vsyncpa [#allocation4], 0
    %s10 = scalar_lea.sflag [#allocation4], 1
    %11 = vsyncpa %s10, 0
    loop: start=0, step=1, limit=4
    $region2: #{tpu_custom_call.1} parent=1 // loop_pre_header
      _
    $region3: #{tpu_custom_call.1} parent=1 // loop_header
      %s13 = sphi 0, %s17
      %p14 = scmp.ge.s32.totalorder %s13, 4
      %s21 = sphi 0, %s21
      %s23 = sphi 0, %s21
      %s24 = sphi 0, %s23
      %s38 = sphi 0, %s24
      %s42 = sphi 0, %s42
      %s44 = sphi 0, %s42
      %s45 = sphi 0, %s44
      %s59 = sphi 0, %s45
      %s65 = sphi 0, %s67
      %s68 = sphi 0, %s65
      %s69 = sphi 0, %s68
      %s85 = sphi 0, %s69
    $region4: #{tpu_custom_call.1} parent=1 // loop_header_branch
      %16 = sbr.rel (%p14) target = $region8
    $region5: #{tpu_custom_call.1} parent=1 // loop_body
      %s18 = ssub.s32 %s13, 1
      %s19 = ssub.s32 %s13, 2
      %s20 = sadd.s32 %s13, 1
      %s22 = sadd.s32 %s21, 1
      %p25 = scmp.eq.s32.totalorder %s13, 1
      %p26 = scmp.ne.s32.totalorder %s21, %s23
      %p27 = scmp.eq.s32.totalorder %s13, 0
      %p28 = por %p26, %p27
      %p29 = scmp.ne.s32.totalorder %s21, %s23
      %p30 = scmp.eq.s32.totalorder %s18, 1
      %p31 = por %p29, %p30
      %p32 = scmp.ne.s32.totalorder %s23, %s24
      %p33 = scmp.eq.s32.totalorder %s18, 0
      %p34 = por %p32, %p33
      %p35 = scmp.ne.s32.totalorder %s23, %s24
      %p36 = scmp.eq.s32.totalorder %s19, 1
      %p37 = por %p35, %p36
      %p39 = scmp.ne.s32.totalorder %s24, %s38
      %p40 = scmp.eq.s32.totalorder %s19, 0
      %p41 = por %p39, %p40
      %s43 = sadd.s32 %s42, 1
      %p46 = scmp.eq.s32.totalorder %s13, 1
      %p47 = scmp.ne.s32.totalorder %s42, %s44
      %p48 = scmp.eq.s32.totalorder %s13, 0
      %p49 = por %p47, %p48
      %p50 = scmp.ne.s32.totalorder %s42, %s44
      %p51 = scmp.eq.s32.totalorder %s18, 1
      %p52 = por %p50, %p51
      %p53 = scmp.ne.s32.totalorder %s44, %s45
      %p54 = scmp.eq.s32.totalorder %s18, 0
      %p55 = por %p53, %p54
      %p56 = scmp.ne.s32.totalorder %s44, %s45
      %p57 = scmp.eq.s32.totalorder %s19, 1
      %p58 = por %p56, %p57
      %p60 = scmp.ne.s32.totalorder %s45, %s59
      %p61 = scmp.eq.s32.totalorder %s19, 0
      %p62 = por %p60, %p61
      %s63 = ssub.s32 %s13, %s20
      %p64 = scmp.eq.s32.totalorder %s63, 0
      %s66 = sadd.s32 %s65, 1
      %s67 = scalar_select %p64, %s65, %s66
      %p70 = pneg %p64
      %p71 = scmp.eq.s32.totalorder %s13, 1
      %p72 = por %p70, %p71
      %p73 = scmp.ne.s32.totalorder %s65, %s68
      %p74 = scmp.eq.s32.totalorder %s13, 0
      %p75 = por %p73, %p74
      %p76 = scmp.ne.s32.totalorder %s65, %s68
      %p77 = scmp.eq.s32.totalorder %s18, 1
      %p78 = por %p76, %p77
      %p79 = scmp.ne.s32.totalorder %s68, %s69
      %p80 = scmp.eq.s32.totalorder %s18, 0
      %p81 = por %p79, %p80
      %p82 = scmp.ne.s32.totalorder %s68, %s69
      %p83 = scmp.eq.s32.totalorder %s19, 1
      %p84 = por %p82, %p83
      %p86 = scmp.ne.s32.totalorder %s69, %s85
      %p87 = scmp.eq.s32.totalorder %s19, 0
      %p88 = por %p86, %p87
      %p89 = scmp.le.s32.totalorder 1, %s13
      %p90 = scmp.lt.s32.totalorder %s13, 3
      %p91 = pnand %p89, %p90
      %p92 = pneg %p91
      // Predicated region
      $region9: #{tpu_custom_call.1} parent=5 // pred_check
        _
      $region10: #{tpu_custom_call.1} parent=5 // pred_check_branch
        %94 = sbr.rel (%p91) target = $region12
      $region11: #{tpu_custom_call.1} parent=5 // pred_region
        %s95 = ssub.s32 %s13, 1
        // Predicated region
        $region13: #{tpu_custom_call.1} parent=11 // pred_check
          %p96 = pneg %p34
        $region14: #{tpu_custom_call.1} parent=11 // pred_check_branch
          %98 = sbr.rel (%p96) target = $region16
        $region15: #{tpu_custom_call.1} parent=11 // pred_region
          %100 = vsyncadd [#allocation3], 0
          %s102 = sshll.u32 %s0, 4
          %s103 = int_to_ptr.hbm [resolvable:$true] %s102
          %s104 = sshll.u32 [#allocation2], 4
          %s105 = int_to_ptr.vmem [resolvable:$true] %s104
          %107 = dma.hbm_to_vmem [thread:$0]  %s103, 128, %s105, [#allocation3]
        $region16: #{tpu_custom_call.1} parent=11 // pred_fallthru
          _
        // Predicated region
        $region17: #{tpu_custom_call.1} parent=11 // pred_check
          %p108 = pneg %p55
        $region18: #{tpu_custom_call.1} parent=11 // pred_check_branch
          %110 = sbr.rel (%p108) target = $region20
        $region19: #{tpu_custom_call.1} parent=11 // pred_region
          %112 = vsyncadd [#allocation6], 0
          %s114 = sshll.u32 %s1, 4
          %s115 = int_to_ptr.hbm [resolvable:$true] %s114
          %s116 = sshll.u32 [#allocation5], 4
          %s117 = int_to_ptr.vmem [resolvable:$true] %s116
          %119 = dma.hbm_to_vmem [thread:$0]  %s115, 128, %s117, [#allocation6]
        $region20: #{tpu_custom_call.1} parent=11 // pred_fallthru
          _
      $region12: #{tpu_custom_call.1} parent=5 // pred_fallthru
        _
      %p120 = scmp.lt.s32.totalorder %s13, 2
      // Predicated region
      $region21: #{tpu_custom_call.1} parent=5 // pred_check
        %p121 = pneg %p120
      $region22: #{tpu_custom_call.1} parent=5 // pred_check_branch
        %123 = sbr.rel (%p121) target = $region24
      $region23: #{tpu_custom_call.1} parent=5 // pred_region
        _
      $region24: #{tpu_custom_call.1} parent=5 // pred_fallthru
        _
      %p124 = scmp.le.s32.totalorder 1, %s13
      %p125 = scmp.lt.s32.totalorder %s13, 3
      %p126 = pnand %p124, %p125
      %p127 = pneg %p126
      // Predicated region
      $region25: #{tpu_custom_call.1} parent=5 // pred_check
        _
      $region26: #{tpu_custom_call.1} parent=5 // pred_check_branch
        %129 = sbr.rel (%p126) target = $region28
      $region27: #{tpu_custom_call.1} parent=5 // pred_region
        %s130 = ssub.s32 %s13, 1
        // Predicated region
        $region29: #{tpu_custom_call.1} parent=27 // pred_check
          %p131 = pneg %p34
        $region30: #{tpu_custom_call.1} parent=27 // pred_check_branch
          %133 = sbr.rel (%p131) target = $region32
        $region31: #{tpu_custom_call.1} parent=27 // pred_region
          %135 = dma.done [#allocation3], 128
        $region32: #{tpu_custom_call.1} parent=27 // pred_fallthru
          _
        // Predicated region
        $region33: #{tpu_custom_call.1} parent=27 // pred_check
          %p136 = pneg %p55
        $region34: #{tpu_custom_call.1} parent=27 // pred_check_branch
          %138 = sbr.rel (%p136) target = $region36
        $region35: #{tpu_custom_call.1} parent=27 // pred_region
          %140 = dma.done [#allocation6], 128
        $region36: #{tpu_custom_call.1} parent=27 // pred_fallthru
          _
        %p141 = pneg %p34
        %p142 = pneg %p31
        %p143 = pneg %p55
        %p144 = pneg %p52
        %p145 = pneg %p81
        %p146 = pneg %p78
        %s147 = sand.u32 %s68, 1
        %s148 = scalar_lea.sflag [#allocation4], %s147
        %s149 = sand.u32 %s68, 1
        %s150 = smul.addr %s149, 8
        %s151 = scalar_lea.vmem [#allocation7], %s150
        %s152 = smul.u32 %s18, 32
        %s153 = scvt.s32.f32 %s152
        %v154 = vld [vmem:[#allocation5] sm:$0xff]
        %v155 = vstv %s153
        %v156 = vadd.f32 %v155, %v154
        %v157 = vld [vmem:[#allocation2] sm:$0xff]
        %v158 = vmul.f32 %v156, %v157
        %v159 = vlaneseq
        %v160 = vand.u32 %v159, 127
        %v161 = vand.u32 %v160, 1
        %vm162 = vcmp.eq.s32.totalorder %v161, 1
        %v163 = vand.u32 2147483647, %v158
        %vm164 = vcmp.le.f32.partialorder %v163, 0.7853982
        %vm165 = vcmp.lt.s32.totalorder %v158, 0
        %v166 = vand.u32 %v158, 2139095040
        %v167 = vshrl.u32 %v166, 23
        %v168 = vsub.s32 %v167, 127
        %v169 = vand.u32 2147483647, %v158
        %v170 = vand.u32 %v169, 8388607
        %v171 = vor.u32 %v170, 8388608
        %v172 = vsub.s32 0, %v171
        %v173 = vadd.s32 %v168, 1
        %vm174 = vcmp.gt.s32.totalorder %v173, 0
        %v175 = vsel %vm174, %v173, 0
        %v176 = vshrl.u32 %v175, 5
        %v177 = vand.u32 %v175, 31
        %v178 = vsub.s32 32, %v177
        %v179 = vshrl.u32 683565275, %v178
        %v180 = vshll.u32 683565275, %v177
        %v181 = vshrl.u32 2475754826, %v178
        %v182 = vor.u32 %v180, %v181
        %v183 = vshll.u32 2475754826, %v177
        %v184 = vshrl.u32 2131351028, %v178
        %v185 = vor.u32 %v183, %v184
        %v186 = vshll.u32 2131351028, %v177
        %v187 = vshrl.u32 2102212464, %v178
        %v188 = vor.u32 %v186, %v187
        %v189 = vshll.u32 2102212464, %v177
        %v190 = vshrl.u32 920167782, %v178
        %v191 = vor.u32 %v189, %v190
        %v192 = vshll.u32 920167782, %v177
        %v193 = vshrl.u32 1326507024, %v178
        %v194 = vor.u32 %v192, %v193
        %vm195 = vcmp.lt.s32.totalorder %v176, 1
        %vm196 = vcmp.lt.s32.totalorder %v176, 2
        %vm197 = vcmp.lt.s32.totalorder %v176, 3
        %vm198 = vcmp.lt.s32.totalorder %v176, 4
        %v199 = vsel %vm195, %v179, %v182
        %v200 = vsel %vm198, %v188, 2102212464
        %v201 = vsel %vm197, %v185, %v200
        %v202 = vsel %vm196, %v199, %v201
        %v203 = vsel %vm195, %v182, %v185
        %v204 = vsel %vm198, %v191, 920167782
        %v205 = vsel %vm197, %v188, %v204
        %v206 = vsel %vm196, %v203, %v205
        %v207 = vsel %vm195, %v185, %v188
        %v208 = vsel %vm198, %v194, 1326507024
        %v209 = vsel %vm197, %v191, %v208
        %v210 = vsel %vm196, %v207, %v209
        %v211 = vshll.u32 %v171, 8
        %v212 = vand.u32 %v211, 65535
        %v213 = vshrl.u32 %v211, 16
        %v214 = vand.u32 %v210, 65535
        %v215 = vshrl.u32 %v210, 16
        %v216 = vmul.u32 %v212, %v214
        %v217 = vmul.u32 %v212, %v215
        %v218 = vmul.u32 %v213, %v214
        %v219 = vmul.u32 %v213, %v215
        %v220 = vshll.u32 %v217, 16
        %v221 = vshrl.u32 %v217, 16
        %v222 = vshll.u32 %v218, 16
        %v223 = vshrl.u32 %v218, 16
        %vm224 = vc.u32 %v216, %v220
        %v225 = vsel %vm224, 1, 0
        %v226 = vadd.s32 %v216, %v220
        %v227 = vadd.s32 %v219, %v225
        %vm228 = vc.u32 %v226, %v222
        %v229 = vsel %vm228, 1, 0
        %v230 = vadd.s32 %v226, %v222
        %v231 = vadd.s32 %v227, %v229
        %v232 = vadd.s32 %v231, %v221
        %v233 = vadd.s32 %v232, %v223
        %v234 = vand.u32 %v211, 65535
        %v235 = vshrl.u32 %v211, 16
        %v236 = vand.u32 %v206, 65535
        %v237 = vshrl.u32 %v206, 16
        %v238 = vmul.u32 %v234, %v236
        %v239 = vmul.u32 %v234, %v237
        %v240 = vmul.u32 %v235, %v236
        %v241 = vmul.u32 %v235, %v237
        %v242 = vshll.u32 %v239, 16
        %v243 = vshrl.u32 %v239, 16
        %v244 = vshll.u32 %v240, 16
        %v245 = vshrl.u32 %v240, 16
        %vm246 = vc.u32 %v238, %v242
        %v247 = vsel %vm246, 1, 0
        %v248 = vadd.s32 %v238, %v242
        %v249 = vadd.s32 %v241, %v247
        %vm250 = vc.u32 %v248, %v244
        %v251 = vsel %vm250, 1, 0
        %v252 = vadd.s32 %v248, %v244
        %v253 = vadd.s32 %v249, %v251
        %v254 = vadd.s32 %v253, %v243
        %v255 = vadd.s32 %v254, %v245
        %v256 = vmul.u32 %v211, %v202
        %v257 = vadd.s32 %v233, %v252
        %vm258 = vc.u32 %v233, %v252
        %v259 = vadd.s32 %v255, 1
        %v260 = vsel %vm258, %v259, %v255
        %v261 = vadd.s32 %v256, %v260
        %v262 = vadd.s32 %v261, 536870912
        %v263 = vshrl.u32 %v262, 30
        %v264 = vshll.u32 %v263, 30
        %v265 = vsub.s32 %v261, %v264
        %vm266 = vcmp.lt.s32.totalorder %v265, 0
        %v267 = vsub.s32 0, %v265
        %v268 = vsel %vm266, %v267, %v265
        %v269 = vclz %v268
        %v270 = vsub.s32 %v269, 2
        %vm271 = vcmp.gt.s32.totalorder 0, %v270
        %v272 = vsel %vm271, 0, %v270
        %v273 = vsub.s32 32, %v272
        %v274 = vshll.u32 %v265, %v272
        %v275 = vshrl.u32 %v257, %v273
        %v276 = vor.u32 %v274, %v275
        %v277 = vsub.s32 4294967266, %v272
        %v278 = vadd.s32 %v277, 127
        %v279 = vshll.u32 %v278, 23
        %v280 = vor.u32 4788187, %v279
        %v281 = vand.u32 2147483647, %v280
        %v283 = vcvt.s32.f32 %v276
        %v284 = vmul.f32 %v283, %v281
        %v285 = vxor.u32 %v284, 2147483648
        %v286 = vsel %vm165, %v285, %v284
        %v287 = vsub.s32 4, %v263
        %v288 = vsel %vm165, %v287, %v263
        %v289 = vsel %vm164, %v158, %v286
        %v290 = vsel %vm164, 0, %v288
        %v291 = vmul.f32 %v289, %v289
        %v292 = vmul.f32 %v291, -0.001358992
        %v293 = vadd.f32 %v292, 0.041655596
        %v294 = vmul.f32 %v291, %v293
        %v295 = vadd.f32 %v294, -0.4999988
        %v296 = vmul.f32 %v291, %v295
        %v297 = vadd.f32 1.0, %v296
        %v298 = vmul.f32 %v289, %v289
        %v299 = vmul.f32 %v298, -0.00019511016
        %v300 = vadd.f32 %v299, 0.008332121
        %v301 = vmul.f32 %v298, %v300
        %v302 = vadd.f32 %v301, -0.16666654
        %v303 = vmul.f32 %v298, %v302
        %v304 = vadd.f32 %v303, 1.0
        %v305 = vmul.f32 %v304, %v289
        %vm306 = vweird.f32 %v158
        %v307 = vand.u32 %v290, 3
        %vm308 = vcmp.lt.s32.totalorder %v307, 2
        %vm309 = vcmp.eq.s32.totalorder %v307, 0
        %v310 = vxor.u32 %v305, 2147483648
        %v311 = vsel %vm309, %v297, %v310
        %vm312 = vcmp.eq.s32.totalorder %v307, 2
        %v313 = vxor.u32 %v297, 2147483648
        %v314 = vsel %vm312, %v313, %v305
        %v315 = vsel %vm308, %v311, %v314
        %v316 = vsel %vm306, nan, %v315
        %v317 = vand.u32 2147483647, %v158
        %vm318 = vcmp.le.f32.partialorder %v317, 0.7853982
        %vm319 = vcmp.lt.s32.totalorder %v158, 0
        %v320 = vand.u32 %v158, 2139095040
        %v321 = vshrl.u32 %v320, 23
        %v322 = vsub.s32 %v321, 127
        %v323 = vand.u32 2147483647, %v158
        %v324 = vand.u32 %v323, 8388607
        %v325 = vor.u32 %v324, 8388608
        %v326 = vsub.s32 0, %v325
        %v327 = vadd.s32 %v322, 1
        %vm328 = vcmp.gt.s32.totalorder %v327, 0
        %v329 = vsel %vm328, %v327, 0
        %v330 = vshrl.u32 %v329, 5
        %v331 = vand.u32 %v329, 31
        %v332 = vsub.s32 32, %v331
        %v333 = vshrl.u32 683565275, %v332
        %v334 = vshll.u32 683565275, %v331
        %v335 = vshrl.u32 2475754826, %v332
        %v336 = vor.u32 %v334, %v335
        %v337 = vshll.u32 2475754826, %v331
        %v338 = vshrl.u32 2131351028, %v332
        %v339 = vor.u32 %v337, %v338
        %v340 = vshll.u32 2131351028, %v331
        %v341 = vshrl.u32 2102212464, %v332
        %v342 = vor.u32 %v340, %v341
        %v343 = vshll.u32 2102212464, %v331
        %v344 = vshrl.u32 920167782, %v332
        %v345 = vor.u32 %v343, %v344
        %v346 = vshll.u32 920167782, %v331
        %v347 = vshrl.u32 1326507024, %v332
        %v348 = vor.u32 %v346, %v347
        %vm349 = vcmp.lt.s32.totalorder %v330, 1
        %vm350 = vcmp.lt.s32.totalorder %v330, 2
        %vm351 = vcmp.lt.s32.totalorder %v330, 3
        %vm352 = vcmp.lt.s32.totalorder %v330, 4
        %v353 = vsel %vm349, %v333, %v336
        %v354 = vsel %vm352, %v342, 2102212464
        %v355 = vsel %vm351, %v339, %v354
        %v356 = vsel %vm350, %v353, %v355
        %v357 = vsel %vm349, %v336, %v339
        %v358 = vsel %vm352, %v345, 920167782
        %v359 = vsel %vm351, %v342, %v358
        %v360 = vsel %vm350, %v357, %v359
        %v361 = vsel %vm349, %v339, %v342
        %v362 = vsel %vm352, %v348, 1326507024
        %v363 = vsel %vm351, %v345, %v362
        %v364 = vsel %vm350, %v361, %v363
        %v365 = vshll.u32 %v325, 8
        %v366 = vand.u32 %v365, 65535
        %v367 = vshrl.u32 %v365, 16
        %v368 = vand.u32 %v364, 65535
        %v369 = vshrl.u32 %v364, 16
        %v370 = vmul.u32 %v366, %v368
        %v371 = vmul.u32 %v366, %v369
        %v372 = vmul.u32 %v367, %v368
        %v373 = vmul.u32 %v367, %v369
        %v374 = vshll.u32 %v371, 16
        %v375 = vshrl.u32 %v371, 16
        %v376 = vshll.u32 %v372, 16
        %v377 = vshrl.u32 %v372, 16
        %vm378 = vc.u32 %v370, %v374
        %v379 = vsel %vm378, 1, 0
        %v380 = vadd.s32 %v370, %v374
        %v381 = vadd.s32 %v373, %v379
        %vm382 = vc.u32 %v380, %v376
        %v383 = vsel %vm382, 1, 0
        %v384 = vadd.s32 %v380, %v376
        %v385 = vadd.s32 %v381, %v383
        %v386 = vadd.s32 %v385, %v375
        %v387 = vadd.s32 %v386, %v377
        %v388 = vand.u32 %v365, 65535
        %v389 = vshrl.u32 %v365, 16
        %v390 = vand.u32 %v360, 65535
        %v391 = vshrl.u32 %v360, 16
        %v392 = vmul.u32 %v388, %v390
        %v393 = vmul.u32 %v388, %v391
        %v394 = vmul.u32 %v389, %v390
        %v395 = vmul.u32 %v389, %v391
        %v396 = vshll.u32 %v393, 16
        %v397 = vshrl.u32 %v393, 16
        %v398 = vshll.u32 %v394, 16
        %v399 = vshrl.u32 %v394, 16
        %vm400 = vc.u32 %v392, %v396
        %v401 = vsel %vm400, 1, 0
        %v402 = vadd.s32 %v392, %v396
        %v403 = vadd.s32 %v395, %v401
        %vm404 = vc.u32 %v402, %v398
        %v405 = vsel %vm404, 1, 0
        %v406 = vadd.s32 %v402, %v398
        %v407 = vadd.s32 %v403, %v405
        %v408 = vadd.s32 %v407, %v397
        %v409 = vadd.s32 %v408, %v399
        %v410 = vmul.u32 %v365, %v356
        %v411 = vadd.s32 %v387, %v406
        %vm412 = vc.u32 %v387, %v406
        %v413 = vadd.s32 %v409, 1
        %v414 = vsel %vm412, %v413, %v409
        %v415 = vadd.s32 %v410, %v414
        %v416 = vadd.s32 %v415, 536870912
        %v417 = vshrl.u32 %v416, 30
        %v418 = vshll.u32 %v417, 30
        %v419 = vsub.s32 %v415, %v418
        %vm420 = vcmp.lt.s32.totalorder %v419, 0
        %v421 = vsub.s32 0, %v419
        %v422 = vsel %vm420, %v421, %v419
        %v423 = vclz %v422
        %v424 = vsub.s32 %v423, 2
        %vm425 = vcmp.gt.s32.totalorder 0, %v424
        %v426 = vsel %vm425, 0, %v424
        %v427 = vsub.s32 32, %v426
        %v428 = vshll.u32 %v419, %v426
        %v429 = vshrl.u32 %v411, %v427
        %v430 = vor.u32 %v428, %v429
        %v431 = vsub.s32 4294967266, %v426
        %v432 = vadd.s32 %v431, 127
        %v433 = vshll.u32 %v432, 23
        %v434 = vor.u32 4788187, %v433
        %v435 = vand.u32 2147483647, %v434
        %v437 = vcvt.s32.f32 %v430
        %v438 = vmul.f32 %v437, %v435
        %v439 = vxor.u32 %v438, 2147483648
        %v440 = vsel %vm319, %v439, %v438
        %v441 = vsub.s32 4, %v417
        %v442 = vsel %vm319, %v441, %v417
        %v443 = vsel %vm318, %v158, %v440
        %v444 = vsel %vm318, 0, %v442
        %v445 = vmul.f32 %v443, %v443
        %v446 = vmul.f32 %v445, -0.001358992
        %v447 = vadd.f32 %v446, 0.041655596
        %v448 = vmul.f32 %v445, %v447
        %v449 = vadd.f32 %v448, -0.4999988
        %v450 = vmul.f32 %v445, %v449
        %v451 = vadd.f32 1.0, %v450
        %v452 = vmul.f32 %v443, %v443
        %v453 = vmul.f32 %v452, -0.00019511016
        %v454 = vadd.f32 %v453, 0.008332121
        %v455 = vmul.f32 %v452, %v454
        %v456 = vadd.f32 %v455, -0.16666654
        %v457 = vmul.f32 %v452, %v456
        %v458 = vadd.f32 %v457, 1.0
        %v459 = vmul.f32 %v458, %v443
        %vm460 = vweird.f32 %v158
        %v461 = vadd.s32 %v444, 3
        %v462 = vand.u32 %v461, 3
        %vm463 = vcmp.lt.s32.totalorder %v462, 2
        %vm464 = vcmp.eq.s32.totalorder %v462, 0
        %v465 = vxor.u32 %v459, 2147483648
        %v466 = vsel %vm464, %v451, %v465
        %vm467 = vcmp.eq.s32.totalorder %v462, 2
        %v468 = vxor.u32 %v451, 2147483648
        %v469 = vsel %vm467, %v468, %v459
        %v470 = vsel %vm463, %v466, %v469
        %v471 = vsel %vm460, nan, %v470
        %v472 = vsel %vm162, %v316, %v471
        %473 = vst [vmem:[%s151] sm:$0xff] %v472
        %s474 = sand.u32 %s68, 1
        %s475 = scalar_lea.sflag [#allocation4], %s474
        %s476 = sand.u32 %s68, 1
        %s477 = smul.addr %s476, 8
        %s478 = scalar_lea.vmem [#allocation7], %s477
        // Predicated region
        $region37: #{tpu_custom_call.1} parent=27 // pred_check
          %p479 = pneg %p78
        $region38: #{tpu_custom_call.1} parent=27 // pred_check_branch
          %481 = sbr.rel (%p479) target = $region40
        $region39: #{tpu_custom_call.1} parent=27 // pred_region
          %483 = vsyncadd %s475, 0
          %s484 = smul.addr %s18, 8
          %s485 = scalar_lea.hbm %s2, %s484
          %s487 = sshll.u32 %s478, 4
          %s488 = int_to_ptr.vmem [resolvable:$true] %s487
          %s489 = sshll.u32 %s485, 4
          %s490 = int_to_ptr.hbm [resolvable:$true] %s489
          %492 = dma.vmem_to_hbm [thread:$0]  %s488, 128, %s490, %s475
        $region40: #{tpu_custom_call.1} parent=27 // pred_fallthru
          _
      $region28: #{tpu_custom_call.1} parent=5 // pred_fallthru
        _
      %p493 = scmp.le.s32.totalorder 2, %s13
      // Predicated region
      $region41: #{tpu_custom_call.1} parent=5 // pred_check
        %p494 = pneg %p493
      $region42: #{tpu_custom_call.1} parent=5 // pred_check_branch
        %496 = sbr.rel (%p494) target = $region44
      $region43: #{tpu_custom_call.1} parent=5 // pred_region
        %s497 = ssub.s32 %s13, 2
        // Predicated region
        $region45: #{tpu_custom_call.1} parent=43 // pred_check
          %p498 = pneg %p84
        $region46: #{tpu_custom_call.1} parent=43 // pred_check_branch
          %500 = sbr.rel (%p498) target = $region48
        $region47: #{tpu_custom_call.1} parent=43 // pred_region
          %s501 = sand.u32 %s69, 1
          %s502 = scalar_lea.sflag [#allocation4], %s501
          %s503 = sand.u32 %s69, 1
          %s504 = smul.addr %s503, 8
          %s505 = scalar_lea.vmem [#allocation7], %s504
          %507 = dma.done %s502, 128
        $region48: #{tpu_custom_call.1} parent=43 // pred_fallthru
          _
      $region44: #{tpu_custom_call.1} parent=5 // pred_fallthru
        _
    $region6: #{tpu_custom_call.1} parent=1 // loop_footer
      %s17 = sadd.s32 1, %s13
    $region7: #{tpu_custom_call.1} parent=1 // loop_footer_branch
      %12 = sbr.rel target = $region3
    $region8: #{tpu_custom_call.1} parent=1 // loop_exit
      _
    %508 = vsyncpa [#allocation3], 1
    %s509 = scalar_lea.sflag [#allocation3], 1
    %510 = vsyncpa %s509, 1
    %511 = vsyncpa [#allocation6], 1
    %512 = vsyncpa [#allocation4], 1
    %s513 = scalar_lea.sflag [#allocation4], 1
    %514 = vsyncpa %s513, 1

</llo_original>
